<compile_context>
chip_gen: v6e
topology: v6e:2x2x1
jax: 0.10.0
libtpu: 0.0.40
codegen_flags: <defaults>
</compile_context>

<pallas_src>
import jax
import jax.numpy as jnp
from jax.experimental import pallas as pl
from jax.experimental.pallas import tpu as pltpu


# --------------------------------------------------------------------------- #
# Kernels
# --------------------------------------------------------------------------- #
def _apc_pred_kernel(x_ref, w_enc_ref, b_enc_ref, w_post_ref, b_post_ref,
                     pred_ref):
    """Fused encoder (affine + tanh) and post_network (Conv1d k=1 == matmul).

    x_ref:      (TILE_T, D_in)     current (batch, time-tile) block of raw input
    w_enc_ref:  (D_in, D_emb_p)    encoder projection   (bf16, VMEM-resident)
    b_enc_ref:  (1, D_emb_p)       f32
    w_post_ref: (D_emb_p, D_in_p)  post_network weights (bf16, VMEM-resident)
    b_post_ref: (1, D_in_p)        f32
    pred_ref:   (TILE_T, D_in_p)   prediction output tile (pred-only: `h` is
                                   never written back to HBM)
    """
    x = x_ref[...].astype(jnp.bfloat16)                       # bf16 MXU operand
    h = jnp.tanh(
        jnp.dot(x, w_enc_ref[...], preferred_element_type=jnp.float32)
        + b_enc_ref[...]                                       # f32 bias + tanh
    )
    pred_ref[...] = (
        jnp.dot(h.astype(jnp.bfloat16), w_post_ref[...],
                preferred_element_type=jnp.float32)
        + b_post_ref[...]
    ).astype(pred_ref.dtype)


def _apc_feat_kernel(x_ref, w_enc_ref, b_enc_ref, feat_ref):
    """extract_features=True path: encoder only (no pred matmul / writeback)."""
    x = x_ref[...].astype(jnp.bfloat16)
    h = jnp.tanh(
        jnp.dot(x, w_enc_ref[...], preferred_element_type=jnp.float32)
        + b_enc_ref[...]
    )
    feat_ref[...] = h.astype(feat_ref.dtype)


# --------------------------------------------------------------------------- #
# Helpers
# --------------------------------------------------------------------------- #
def _round_up(v, m):
    return -(-v // m) * m


def _pad_axis(a, axis, new_size):
    pad = new_size - a.shape[axis]
    if pad == 0:
        return a
    widths = [(0, 0)] * a.ndim
    widths[axis] = (0, pad)
    return jnp.pad(a, widths)


def _vmem_capacity_bytes():
    try:
        return int(pltpu.get_tpu_info().vmem_capacity_bytes)
    except Exception:
        return 64 << 20          # conservative (v7x per-TensorCore VMEM)


def _working_set_bytes(tile_t, d_in, d_in_p, d_emb_p, in_itemsize, out_itemsize,
                       extract_features):
    """Double-buffered I/O tiles + resident weights + in-kernel intermediates."""
    x_tile = tile_t * d_in * in_itemsize
    x_bf16 = tile_t * d_in * 2
    h_f32 = tile_t * d_emb_p * 4
    if extract_features:
        out_tile = tile_t * d_emb_p * out_itemsize
        weights = d_in * d_emb_p * 2 + d_emb_p * 4
        intermediates = x_bf16 + h_f32
    else:
        out_tile = tile_t * d_in_p * out_itemsize
        weights = (d_in * d_emb_p + d_emb_p * d_in_p) * 2 + (d_emb_p + d_in_p) * 4
        intermediates = x_bf16 + h_f32 + tile_t * d_emb_p * 2 + tile_t * d_in_p * 4
    return 2 * (x_tile + out_tile) + 2 * weights + intermediates


# --------------------------------------------------------------------------- #
# Pallas wrapper
# --------------------------------------------------------------------------- #
def _apc_pallas(x, w_enc, b_enc, w_post, b_post, time_shift,
                extract_features=False, tile_t=1024, out_dtype=jnp.bfloat16):
    """Tiled, pipelined APC forward.  x is the ORIGINAL (B, T, D_in) buffer."""
    B, T, d_in = x.shape
    if T <= time_shift:
        raise ValueError(
            f"Sequence length {T} must exceed time_shift {time_shift}.")
    d_emb = w_enc.shape[1]
    Tp = T - time_shift

    out_dtype = jnp.dtype(out_dtype)
    in_itemsize = jnp.dtype(x.dtype).itemsize
    out_itemsize = out_dtype.itemsize

    # Lane-dense padding of model dims (APC log-mel d_in ~ 80 is not a multiple
    # of 128): pad w_post's N dim (+ pred output lanes) and d_emb if needed so
    # output stores are unmasked vst and the 2nd matmul's K is full-lane.
    # x's own last dim stays unpadded (full-extent block is legal).
    d_emb_p = _round_up(d_emb, 128)
    d_in_p = _round_up(d_in, 128)

    # bf16 MXU operands for the weights (tiny, VMEM-resident); biases stay f32.
    # Zero padding keeps the math exact: padded h columns are tanh(0)=0 and the
    # matching w_post rows are 0.
    w_enc_p = _pad_axis(w_enc.astype(jnp.bfloat16), 1, d_emb_p)
    b_enc_p = _pad_axis(b_enc.astype(jnp.float32), 1, d_emb_p)
    w_post_p = _pad_axis(_pad_axis(w_post.astype(jnp.bfloat16), 0, d_emb_p),
                         1, d_in_p)
    b_post_p = _pad_axis(b_post.astype(jnp.float32), 1, d_in_p)

    # ---- tile_t selection (sublane-aligned, VMEM- and megacore-aware) ------ #
    headroom = 4 << 20
    vmem_budget = int(0.75 * _vmem_capacity_bytes())

    tile_t = max(8, min(tile_t, _round_up(Tp, 8)))
    if B == 1:
        # v7x has 2 TensorCores sharding the "parallel" axes: keep n_t >= 2.
        while tile_t > 8 and pl.cdiv(Tp, tile_t) < 2:
            tile_t = max(8, _round_up(tile_t // 2, 8))
    while tile_t > 8 and (_working_set_bytes(
            tile_t, d_in, d_in_p, d_emb_p, in_itemsize, out_itemsize,
            extract_features) + headroom) > vmem_budget:
        tile_t = max(8, _round_up(tile_t // 2, 8))
    n_t = pl.cdiv(Tp, tile_t)

    ws = _working_set_bytes(tile_t, d_in, d_in_p, d_emb_p, in_itemsize,
                            out_itemsize, extract_features)
    vmem_limit = int(min(max(ws + headroom, 16 << 20), vmem_budget))

    cparams = pltpu.CompilerParams(
        dimension_semantics=("parallel", "parallel"),
        vmem_limit_bytes=vmem_limit,
    )

    # Input tile indexes the un-sliced x; output blocks beyond Tp are masked,
    # so the time-shift slice is realized purely through the index map.  The
    # last tile may read (padded) rows past Tp/T — benign because the matching
    # output rows are never written.
    x_spec = pl.BlockSpec((None, tile_t, d_in), lambda b, t: (b, t, 0))
    const = lambda shape: pl.BlockSpec(shape, lambda b, t: (0, 0))

    n_rows = B * Tp
    flops_enc = 2 * n_rows * d_in * d_emb_p
    x_bytes = x.size * in_itemsize

    if extract_features:
        feat_spec = pl.BlockSpec((None, tile_t, d_emb_p), lambda b, t: (b, t, 0))
        w_bytes = w_enc_p.size * 2 + b_enc_p.size * 4
        feat = pl.pallas_call(
            _apc_feat_kernel,
            out_shape=jax.ShapeDtypeStruct((B, Tp, d_emb_p), out_dtype),
            grid=(B, n_t),
            in_specs=[x_spec, const((d_in, d_emb_p)), const((1, d_emb_p))],
            out_specs=feat_spec,
            compiler_params=cparams,
            cost_estimate=pl.CostEstimate(
                flops=flops_enc,
                transcendentals=n_rows * d_emb_p,
                bytes_accessed=x_bytes + w_bytes + n_rows * d_emb_p * out_itemsize,
            ),
        )(x, w_enc_p, b_enc_p)
        if d_emb_p != d_emb:
            feat = feat[:, :, :d_emb]
        return None, feat

    pred_spec = pl.BlockSpec((None, tile_t, d_in_p), lambda b, t: (b, t, 0))
    w_bytes = (w_enc_p.size + w_post_p.size) * 2 + (b_enc_p.size + b_post_p.size) * 4
    pred = pl.pallas_call(
        _apc_pred_kernel,
        out_shape=jax.ShapeDtypeStruct((B, Tp, d_in_p), out_dtype),
        grid=(B, n_t),
        in_specs=[
            x_spec,
            const((d_in, d_emb_p)),
            const((1, d_emb_p)),
            const((d_emb_p, d_in_p)),
            const((1, d_in_p)),
        ],
        out_specs=pred_spec,
        compiler_params=cparams,
        cost_estimate=pl.CostEstimate(
            flops=flops_enc + 2 * n_rows * d_emb_p * d_in_p,
            transcendentals=n_rows * d_emb_p,
            bytes_accessed=x_bytes + w_bytes + n_rows * d_in_p * out_itemsize,
        ),
    )(x, w_enc_p, b_enc_p, w_post_p, b_post_p)
    if d_in_p != d_in:
        pred = pred[:, :, :d_in]
    return pred, None


# --------------------------------------------------------------------------- #
# Module-level API (mirrors the PyTorch APC.forward)
# --------------------------------------------------------------------------- #
class APCParams:
    """Deterministic parameter container mirroring the PyTorch module's __init__."""

    def __init__(self, input_dim, encoder_embedding_dim, key):
        k1, k2, k3, k4 = jax.random.split(key, 4)
        self.input_dim = input_dim
        self.encoder_embedding_dim = encoder_embedding_dim
        # encoder: Linear(input_dim -> encoder_embedding_dim) + tanh
        self.w_enc = jax.random.normal(k1, (input_dim, encoder_embedding_dim),
                                       jnp.float32) * 0.1
        self.b_enc = jax.random.normal(k2, (1, encoder_embedding_dim),
                                       jnp.float32) * 0.01
        # post_network: Conv1d(encoder_embedding_dim -> input_dim, kernel_size=1)
        self.w_post = jax.random.normal(k3, (encoder_embedding_dim, input_dim),
                                        jnp.float32) * 0.1
        self.b_post = jax.random.normal(k4, (1, input_dim), jnp.float32) * 0.01


def apc_forward(params, x, lengths, time_shift=3, extract_features=False,
                out_dtype=jnp.bfloat16):
    """Matches APC.forward semantics (eval mode, dropout p=0, no input_projection).

    Note (same as the PyTorch module): `lengths` is only shifted, not used to
    mask padded timesteps — padded rows are computed and written as in the
    reference.  Outputs are stored in `out_dtype` (bf16 by default: the f32
    accumulator is only cast at the final store), which halves writeback bytes
    on this HBM-bound kernel.
    """
    target = x[:, time_shift:]                 # (B, T - time_shift, D_in)
    lengths = lengths - time_shift
    # input_dropout: identity (eval / p=0.0);  input_projection: None

    pred, feat = _apc_pallas(
        x, params.w_enc, params.b_enc, params.w_post, params.b_post,
        time_shift, extract_features=extract_features, out_dtype=out_dtype,
    )
    if extract_features:
        return feat
    return pred, target, lengths


# --------------------------------------------------------------------------- #
# Demo / self-test
# --------------------------------------------------------------------------- #
if __name__ == "__main__":
    # Realistic (small) APC shapes: 80 log-mel bins (NOT a multiple of 128, so
    # the lane-padding path is exercised) and a 256-dim encoder embedding.
    B, T, D_IN, D_EMB = 2, 16, 80, 256
    TIME_SHIFT = 3

    key = jax.random.PRNGKey(0)
    kx, kp = jax.random.split(key)
    x = jax.random.normal(kx, (B, T, D_IN), jnp.float32)
    lengths = jnp.array([T, T - 2], dtype=jnp.int32)

    params = APCParams(D_IN, D_EMB, kp)

    prediction, target, out_lengths = apc_forward(params, x, lengths,
                                                  time_shift=TIME_SHIFT)
    features = apc_forward(params, x, lengths, time_shift=TIME_SHIFT,
                           extract_features=True)
    jax.block_until_ready((prediction, target, out_lengths, features))

    # Pure-JAX reference with the same bf16-operand / f32-accumulation recipe.
    x_in = x[:, :-TIME_SHIFT]
    w_enc_bf = params.w_enc.astype(jnp.bfloat16)
    w_post_bf = params.w_post.astype(jnp.bfloat16)
    h_ref = jnp.tanh(
        jnp.dot(x_in.astype(jnp.bfloat16), w_enc_bf,
                preferred_element_type=jnp.float32) + params.b_enc)
    pred_ref = (jnp.dot(h_ref.astype(jnp.bfloat16), w_post_bf,
                        preferred_element_type=jnp.float32) + params.b_post)

    Tp = T - TIME_SHIFT
    assert prediction.shape == (B, Tp, D_IN)
    assert target.shape == (B, Tp, D_IN)
    assert out_lengths.shape == (B,)
    assert features.shape == (B, Tp, D_EMB)
    # bf16 output storage -> compare in f32 with bf16-level tolerances.
    assert jnp.allclose(prediction.astype(jnp.float32), pred_ref,
                        atol=2e-2, rtol=2e-2)
    assert jnp.allclose(features.astype(jnp.float32), h_ref,
                        atol=2e-2, rtol=2e-2)
    assert jnp.allclose(target, x[:, TIME_SHIFT:])
    assert jnp.all(out_lengths == lengths - TIME_SHIFT)

    print("KERNEL_OK")
</pallas_src>

<mosaic_0001>
module attributes {stable_mosaic.version = 11 : i64} {
  func.func @_apc_pred_kernel(%arg0: i32, %arg1: i32, %arg2: memref<1x16x80xf32, #tpu.memory_space<vmem>>, %arg3: memref<80x256xbf16, #tpu.memory_space<vmem>>, %arg4: memref<1x256xf32, #tpu.memory_space<vmem>>, %arg5: memref<256x128xbf16, #tpu.memory_space<vmem>>, %arg6: memref<1x128xf32, #tpu.memory_space<vmem>>, %arg7: memref<1x16x128xbf16, #tpu.memory_space<vmem>>) attributes {dimension_semantics = [#tpu.dimension_semantics<parallel>, #tpu.dimension_semantics<parallel>], iteration_bounds = array<i64: 2, 1>, scalar_prefetch = 0 : i64, scratch_operands = 0 : i64, tpu.core_type = #tpu.core_type<tc>, window_params = [{transform_indices = @transform_0, window_bounds = array<i64: 1, 16, 80>}, {pipeline_mode = #tpu.pipeline_mode<synchronous>, transform_indices = @transform_1, window_bounds = array<i64: 80, 256>}, {pipeline_mode = #tpu.pipeline_mode<synchronous>, transform_indices = @transform_2, window_bounds = array<i64: 1, 256>}, {pipeline_mode = #tpu.pipeline_mode<synchronous>, transform_indices = @transform_3, window_bounds = array<i64: 256, 128>}, {pipeline_mode = #tpu.pipeline_mode<synchronous>, transform_indices = @transform_4, window_bounds = array<i64: 1, 128>}, {transform_indices = @transform_5, window_bounds = array<i64: 1, 16, 128>}]} {
    %c0 = arith.constant 0 : index
    %c0_0 = arith.constant 0 : index
    %c0_1 = arith.constant 0 : index
    %0 = vector.load %arg2[%c0, %c0_0, %c0_1] : memref<1x16x80xf32, #tpu.memory_space<vmem>>, vector<1x16x80xf32>
    %1 = vector.shape_cast %0 : vector<1x16x80xf32> to vector<16x80xf32>
    %2 = arith.truncf %1 : vector<16x80xf32> to vector<16x80xbf16>
    %c0_2 = arith.constant 0 : index
    %c0_3 = arith.constant 0 : index
    %3 = vector.load %arg3[%c0_2, %c0_3] : memref<80x256xbf16, #tpu.memory_space<vmem>>, vector<80x256xbf16>
    %cst = arith.constant dense<0.000000e+00> : vector<16x256xf32>
    %4 = tpu.matmul %2, %3, %cst {dimension_numbers = #tpu.dot_dimension_numbers<[1], [0], [0], [1], [0, 0, 1, 1], [], []>} : vector<16x80xbf16>, vector<80x256xbf16>, vector<16x256xf32> -> vector<16x256xf32>
    %c0_4 = arith.constant 0 : index
    %c0_5 = arith.constant 0 : index
    %5 = vector.load %arg4[%c0_4, %c0_5] : memref<1x256xf32, #tpu.memory_space<vmem>>, vector<1x256xf32>
    %6 = vector.broadcast %5 : vector<1x256xf32> to vector<16x256xf32>
    %7 = arith.addf %4, %6 : vector<16x256xf32>
    %8 = math.tanh %7 : vector<16x256xf32>
    %9 = arith.truncf %8 : vector<16x256xf32> to vector<16x256xbf16>
    %c0_6 = arith.constant 0 : index
    %c0_7 = arith.constant 0 : index
    %10 = vector.load %arg5[%c0_6, %c0_7] : memref<256x128xbf16, #tpu.memory_space<vmem>>, vector<256x128xbf16>
    %cst_8 = arith.constant dense<0.000000e+00> : vector<16x128xf32>
    %11 = tpu.matmul %9, %10, %cst_8 {dimension_numbers = #tpu.dot_dimension_numbers<[1], [0], [0], [1], [0, 0, 1, 1], [], []>} : vector<16x256xbf16>, vector<256x128xbf16>, vector<16x128xf32> -> vector<16x128xf32>
    %c0_9 = arith.constant 0 : index
    %c0_10 = arith.constant 0 : index
    %12 = vector.load %arg6[%c0_9, %c0_10] : memref<1x128xf32, #tpu.memory_space<vmem>>, vector<1x128xf32>
    %13 = vector.broadcast %12 : vector<1x128xf32> to vector<16x128xf32>
    %14 = arith.addf %11, %13 : vector<16x128xf32>
    %15 = arith.truncf %14 : vector<16x128xf32> to vector<16x128xbf16>
    %c0_11 = arith.constant 0 : index
    %c0_12 = arith.constant 0 : index
    %c0_13 = arith.constant 0 : index
    %16 = vector.load %arg7[%c0_11, %c0_12, %c0_13] : memref<1x16x128xbf16, #tpu.memory_space<vmem>>, vector<1x16x128xbf16>
    %17 = vector.shape_cast %16 : vector<1x16x128xbf16> to vector<16x128xbf16>
    %18 = vector.shape_cast %15 : vector<16x128xbf16> to vector<1x16x128xbf16>
    tpu.vector_store %arg7[%c0_11, %c0_12, %c0_13], %18 {strides = array<i32>} : memref<1x16x128xbf16, #tpu.memory_space<vmem>>, vector<1x16x128xbf16>,
    return
  }
  func.func @transform_0(%arg0: i32, %arg1: i32) -> (i32, i32, i32) {
    %c0_i32 = arith.constant 0 : i32
    %c0_i32_0 = arith.constant 0 : i32
    return %arg0, %arg1, %c0_i32 : i32, i32, i32
  }
  func.func @transform_1(%arg0: i32, %arg1: i32) -> (i32, i32) {
    %c0_i32 = arith.constant 0 : i32
    %c0_i32_0 = arith.constant 0 : i32
    %c0_i32_1 = arith.constant 0 : i32
    return %c0_i32, %c0_i32_0 : i32, i32
  }
  func.func @transform_2(%arg0: i32, %arg1: i32) -> (i32, i32) {
    %c0_i32 = arith.constant 0 : i32
    %c0_i32_0 = arith.constant 0 : i32
    %c0_i32_1 = arith.constant 0 : i32
    return %c0_i32, %c0_i32_0 : i32, i32
  }
  func.func @transform_3(%arg0: i32, %arg1: i32) -> (i32, i32) {
    %c0_i32 = arith.constant 0 : i32
    %c0_i32_0 = arith.constant 0 : i32
    %c0_i32_1 = arith.constant 0 : i32
    return %c0_i32, %c0_i32_0 : i32, i32
  }
  func.func @transform_4(%arg0: i32, %arg1: i32) -> (i32, i32) {
    %c0_i32 = arith.constant 0 : i32
    %c0_i32_0 = arith.constant 0 : i32
    %c0_i32_1 = arith.constant 0 : i32
    return %c0_i32, %c0_i32_0 : i32, i32
  }
  func.func @transform_5(%arg0: i32, %arg1: i32) -> (i32, i32, i32) {
    %c0_i32 = arith.constant 0 : i32
    %c0_i32_0 = arith.constant 0 : i32
    return %arg0, %arg1, %c0_i32 : i32, i32, i32
  }
}

</mosaic_0001>

<llo_original>
// kernel: tpu_custom_call.1
$region0: #{tpu_custom_call.1}
  #allocation0 [shape = 'u32[]', space=smem, size = 0x4, offset = 0x4, fixed_abs, tag = 'smem constant byte address 0x4 - core index']
  #allocation1 [shape = 'u32[144,128]{1,0:T(1,128)}', space=vmem, size = 0x12000, scoped, tag = 'internal scratch']
  %s0 = inlined_call_operand.hbm [shape: f32[2,16,80], index: 0, kind: input, shape index: {}]
  %s1 = inlined_call_operand.hbm [shape: bf16[80,256], index: 1, kind: input, shape index: {}]
  %s2 = inlined_call_operand.vmem [shape: f32[1,256], index: 2, kind: input, shape index: {}]
  %s3 = inlined_call_operand.hbm [shape: bf16[256,128], index: 3, kind: input, shape index: {}]
  %s4 = inlined_call_operand.vmem [shape: f32[1,128], index: 4, kind: input, shape index: {}]
  %s5 = inlined_call_operand.vmem [shape: bf16[2,13,128], index: 5, kind: output, shape index: {}]
  %s6 = sld [smem:[#allocation0]]
  $region65: #{tpu_custom_call.1} parent=0
    _
  %s8 = ssub.s32 1, %s6
  %s9 = scalar_select 0, %s8, %s6
  $region1: #{tpu_custom_call.1} parent=0
    #allocation2 [shape = 'u8[16384]{0}', space=vmem, size = 0x4000, scoped, tag = 'input window, operand 0']
    #allocation3 [shape = 's32[2]{0}', space=sflag, size = 0x8, scoped, tag = 'scoped memory for tpu_custom_call.1']
    #allocation4 [shape = 'u8[40960]{0}', space=vmem, size = 0xa000, scoped, tag = 'input window, operand 1, single buffered']
    #allocation5 [shape = 's32[1]{0}', space=sflag, size = 0x4, scoped, tag = 'scoped memory for tpu_custom_call.1']
    #allocation6 [shape = 'u8[65536]{0}', space=vmem, size = 0x10000, scoped, tag = 'input window, operand 3, single buffered']
    %10 = vsyncpa [#allocation3], 0
    %s11 = scalar_lea.sflag [#allocation3], 1
    %12 = vsyncpa %s11, 0
    %13 = vsyncpa [#allocation5], 0
    loop: start=0, step=1, limit=4
    $region2: #{tpu_custom_call.1} parent=1 // loop_pre_header
      _
    $region3: #{tpu_custom_call.1} parent=1 // loop_header
      %s15 = sphi 0, %s19
      %p16 = scmp.ge.s32.totalorder %s15, 4
      %s22 = sphi 0, %s34
      %s23 = sphi 0, %s30
      %s24 = sphi 0, %s22
      %s25 = sphi 0, %s23
      %s26 = sphi 0, %s24
      %s27 = sphi 0, %s25
      %s39 = sphi 0, %s41
      %s42 = sphi 0, %s39
      %s43 = sphi 0, %s42
      %s59 = sphi 0, %s43
      %s63 = sphi 0, %s63
      %s65 = sphi 0, %s63
      %s66 = sphi 0, %s65
      %s80 = sphi 0, %s66
      %s84 = sphi 0, %s84
      %s86 = sphi 0, %s84
      %s87 = sphi 0, %s86
      %s101 = sphi 0, %s87
      %s105 = sphi 0, %s105
      %s107 = sphi 0, %s105
      %s108 = sphi 0, %s107
      %s122 = sphi 0, %s108
      %s126 = sphi 0, %s126
      %s128 = sphi 0, %s126
      %s129 = sphi 0, %s128
      %s143 = sphi 0, %s129
      %s151 = sphi 0, %s153
      %s154 = sphi 0, %s151
      %s155 = sphi 0, %s154
      %s171 = sphi 0, %s155
    $region4: #{tpu_custom_call.1} parent=1 // loop_header_branch
      %18 = sbr.rel (%p16) target = $region8
    $region5: #{tpu_custom_call.1} parent=1 // loop_body
      %s20 = ssub.s32 %s15, 1
      %s21 = ssub.s32 %s15, 2
      %s28 = sadd.s32 1, %s23
      %p29 = scmp.ge.s32.totalorder %s28, 1
      %s30 = scalar_select %p29, 0, %s28
      %s31 = sadd.s32 1, %s22
      %s32 = scalar_select %p29, %s31, %s22
      %p33 = scmp.ge.s32.totalorder %s32, 2
      %s34 = scalar_select %p33, 0, %s32
      %s35 = ssub.s32 %s22, %s34
      %s36 = ssub.s32 %s23, %s30
      %s37 = sor.u32 %s35, %s36
      %p38 = scmp.eq.s32.totalorder %s37, 0
      %s40 = sadd.s32 %s39, 1
      %s41 = scalar_select %p38, %s39, %s40
      %p44 = pneg %p38
      %p45 = scmp.eq.s32.totalorder %s15, 1
      %p46 = por %p44, %p45
      %p47 = scmp.ne.s32.totalorder %s39, %s42
      %p48 = scmp.eq.s32.totalorder %s15, 0
      %p49 = por %p47, %p48
      %p50 = scmp.ne.s32.totalorder %s39, %s42
      %p51 = scmp.eq.s32.totalorder %s20, 1
      %p52 = por %p50, %p51
      %p53 = scmp.ne.s32.totalorder %s42, %s43
      %p54 = scmp.eq.s32.totalorder %s20, 0
      %p55 = por %p53, %p54
      %p56 = scmp.ne.s32.totalorder %s42, %s43
      %p57 = scmp.eq.s32.totalorder %s21, 1
      %p58 = por %p56, %p57
      %p60 = scmp.ne.s32.totalorder %s43, %s59
      %p61 = scmp.eq.s32.totalorder %s21, 0
      %p62 = por %p60, %p61
      %s64 = sadd.s32 %s63, 1
      %p67 = scmp.eq.s32.totalorder %s15, 1
      %p68 = scmp.ne.s32.totalorder %s63, %s65
      %p69 = scmp.eq.s32.totalorder %s15, 0
      %p70 = por %p68, %p69
      %p71 = scmp.ne.s32.totalorder %s63, %s65
      %p72 = scmp.eq.s32.totalorder %s20, 1
      %p73 = por %p71, %p72
      %p74 = scmp.ne.s32.totalorder %s65, %s66
      %p75 = scmp.eq.s32.totalorder %s20, 0
      %p76 = por %p74, %p75
      %p77 = scmp.ne.s32.totalorder %s65, %s66
      %p78 = scmp.eq.s32.totalorder %s21, 1
      %p79 = por %p77, %p78
      %p81 = scmp.ne.s32.totalorder %s66, %s80
      %p82 = scmp.eq.s32.totalorder %s21, 0
      %p83 = por %p81, %p82
      %s85 = sadd.s32 %s84, 1
      %p88 = scmp.eq.s32.totalorder %s15, 1
      %p89 = scmp.ne.s32.totalorder %s84, %s86
      %p90 = scmp.eq.s32.totalorder %s15, 0
      %p91 = por %p89, %p90
      %p92 = scmp.ne.s32.totalorder %s84, %s86
      %p93 = scmp.eq.s32.totalorder %s20, 1
      %p94 = por %p92, %p93
      %p95 = scmp.ne.s32.totalorder %s86, %s87
      %p96 = scmp.eq.s32.totalorder %s20, 0
      %p97 = por %p95, %p96
      %p98 = scmp.ne.s32.totalorder %s86, %s87
      %p99 = scmp.eq.s32.totalorder %s21, 1
      %p100 = por %p98, %p99
      %p102 = scmp.ne.s32.totalorder %s87, %s101
      %p103 = scmp.eq.s32.totalorder %s21, 0
      %p104 = por %p102, %p103
      %s106 = sadd.s32 %s105, 1
      %p109 = scmp.eq.s32.totalorder %s15, 1
      %p110 = scmp.ne.s32.totalorder %s105, %s107
      %p111 = scmp.eq.s32.totalorder %s15, 0
      %p112 = por %p110, %p111
      %p113 = scmp.ne.s32.totalorder %s105, %s107
      %p114 = scmp.eq.s32.totalorder %s20, 1
      %p115 = por %p113, %p114
      %p116 = scmp.ne.s32.totalorder %s107, %s108
      %p117 = scmp.eq.s32.totalorder %s20, 0
      %p118 = por %p116, %p117
      %p119 = scmp.ne.s32.totalorder %s107, %s108
      %p120 = scmp.eq.s32.totalorder %s21, 1
      %p121 = por %p119, %p120
      %p123 = scmp.ne.s32.totalorder %s108, %s122
      %p124 = scmp.eq.s32.totalorder %s21, 0
      %p125 = por %p123, %p124
      %s127 = sadd.s32 %s126, 1
      %p130 = scmp.eq.s32.totalorder %s15, 1
      %p131 = scmp.ne.s32.totalorder %s126, %s128
      %p132 = scmp.eq.s32.totalorder %s15, 0
      %p133 = por %p131, %p132
      %p134 = scmp.ne.s32.totalorder %s126, %s128
      %p135 = scmp.eq.s32.totalorder %s20, 1
      %p136 = por %p134, %p135
      %p137 = scmp.ne.s32.totalorder %s128, %s129
      %p138 = scmp.eq.s32.totalorder %s20, 0
      %p139 = por %p137, %p138
      %p140 = scmp.ne.s32.totalorder %s128, %s129
      %p141 = scmp.eq.s32.totalorder %s21, 1
      %p142 = por %p140, %p141
      %p144 = scmp.ne.s32.totalorder %s129, %s143
      %p145 = scmp.eq.s32.totalorder %s21, 0
      %p146 = por %p144, %p145
      %s147 = ssub.s32 %s22, %s34
      %s148 = ssub.s32 %s23, %s30
      %s149 = sor.u32 %s147, %s148
      %p150 = scmp.eq.s32.totalorder %s149, 0
      %s152 = sadd.s32 %s151, 1
      %s153 = scalar_select %p150, %s151, %s152
      %p156 = pneg %p150
      %p157 = scmp.eq.s32.totalorder %s15, 1
      %p158 = por %p156, %p157
      %p159 = scmp.ne.s32.totalorder %s151, %s154
      %p160 = scmp.eq.s32.totalorder %s15, 0
      %p161 = por %p159, %p160
      %p162 = scmp.ne.s32.totalorder %s151, %s154
      %p163 = scmp.eq.s32.totalorder %s20, 1
      %p164 = por %p162, %p163
      %p165 = scmp.ne.s32.totalorder %s154, %s155
      %p166 = scmp.eq.s32.totalorder %s20, 0
      %p167 = por %p165, %p166
      %p168 = scmp.ne.s32.totalorder %s154, %s155
      %p169 = scmp.eq.s32.totalorder %s21, 1
      %p170 = por %p168, %p169
      %p172 = scmp.ne.s32.totalorder %s155, %s171
      %p173 = scmp.eq.s32.totalorder %s21, 0
      %p174 = por %p172, %p173
      %p175 = scmp.le.s32.totalorder 1, %s15
      %p176 = scmp.lt.s32.totalorder %s15, 3
      %p177 = pnand %p175, %p176
      %p178 = pneg %p177
      // Predicated region
      $region9: #{tpu_custom_call.1} parent=5 // pred_check
        _
      $region10: #{tpu_custom_call.1} parent=5 // pred_check_branch
        %180 = sbr.rel (%p177) target = $region12
      $region11: #{tpu_custom_call.1} parent=5 // pred_region
        %s181 = ssub.s32 %s15, 1
        // Predicated region
        $region13: #{tpu_custom_call.1} parent=11 // pred_check
          %p182 = pneg %p76
        $region14: #{tpu_custom_call.1} parent=11 // pred_check_branch
          %184 = sbr.rel (%p182) target = $region16
        $region15: #{tpu_custom_call.1} parent=11 // pred_region
          %s186 = ssub.s32 1280, 1280
          %187 = vsyncadd [#allocation5], %s186
          %s188 = sshll.u32 [#allocation4], 4
          %s189 = int_to_ptr.vmem [resolvable:$true] %s188
          %194 = dma.hbm_to_vmem [thread:$0]  %s1, 1280, %s189, [#allocation5], 128, 128, 8
        $region16: #{tpu_custom_call.1} parent=11 // pred_fallthru
          _
        // Predicated region
        $region17: #{tpu_custom_call.1} parent=11 // pred_check
          %p195 = pneg %p97
        $region18: #{tpu_custom_call.1} parent=11 // pred_check_branch
          %197 = sbr.rel (%p195) target = $region20
        $region19: #{tpu_custom_call.1} parent=11 // pred_region
          _
        $region20: #{tpu_custom_call.1} parent=11 // pred_fallthru
          _
        // Predicated region
        $region21: #{tpu_custom_call.1} parent=11 // pred_check
          %p198 = pneg %p118
        $region22: #{tpu_custom_call.1} parent=11 // pred_check_branch
          %200 = sbr.rel (%p198) target = $region24
        $region23: #{tpu_custom_call.1} parent=11 // pred_region
          %s202 = ssub.s32 2048, 2048
          %203 = vsyncadd [#allocation5], %s202
          %s204 = sshll.u32 [#allocation6], 4
          %s205 = int_to_ptr.vmem [resolvable:$true] %s204
          %210 = dma.hbm_to_vmem [thread:$0]  %s3, 2048, %s205, [#allocation5], 64, 64, 4
        $region24: #{tpu_custom_call.1} parent=11 // pred_fallthru
          _
        // Predicated region
        $region25: #{tpu_custom_call.1} parent=11 // pred_check
          %p211 = pneg %p139
        $region26: #{tpu_custom_call.1} parent=11 // pred_check_branch
          %213 = sbr.rel (%p211) target = $region28
        $region27: #{tpu_custom_call.1} parent=11 // pred_region
          _
        $region28: #{tpu_custom_call.1} parent=11 // pred_fallthru
          _
      $region12: #{tpu_custom_call.1} parent=5 // pred_fallthru
        _
      %p214 = scmp.lt.s32.totalorder %s15, 2
      // Predicated region
      $region29: #{tpu_custom_call.1} parent=5 // pred_check
        %p215 = pneg %p214
      $region30: #{tpu_custom_call.1} parent=5 // pred_check_branch
        %217 = sbr.rel (%p215) target = $region32
      $region31: #{tpu_custom_call.1} parent=5 // pred_region
        // Predicated region
        $region33: #{tpu_custom_call.1} parent=31 // pred_check
          %p218 = pneg %p49
        $region34: #{tpu_custom_call.1} parent=31 // pred_check_branch
          %220 = sbr.rel (%p218) target = $region36
        $region35: #{tpu_custom_call.1} parent=31 // pred_region
          %s221 = sand.u32 %s39, 1
          %s222 = scalar_lea.sflag [#allocation3], %s221
          %s223 = sand.u32 %s39, 1
          %s224 = smul.addr %s223, 16
          %s225 = scalar_lea.vmem [#allocation2], %s224
          %s226 = smul.u32 2, %s23
          %s228 = ssub.s32 256, 256
          %229 = vsyncadd %s222, %s228
          %s230 = smul.addr %s22, 2
          %s231 = sadd.s32 %s226, %s230
          %s232 = smul.addr %s231, 128
          %s233 = scalar_lea.hbm %s0, %s232
          %s234 = sshll.u32 %s225, 4
          %s235 = int_to_ptr.vmem [resolvable:$true] %s234
          %240 = dma.hbm_to_vmem [thread:$0]  %s233, 256, %s235, %s222, 128, 128, 8
        $region36: #{tpu_custom_call.1} parent=31 // pred_fallthru
          _
      $region32: #{tpu_custom_call.1} parent=5 // pred_fallthru
        _
      %p241 = scmp.le.s32.totalorder 1, %s15
      %p242 = scmp.lt.s32.totalorder %s15, 3
      %p243 = pnand %p241, %p242
      %p244 = pneg %p243
      // Predicated region
      $region37: #{tpu_custom_call.1} parent=5 // pred_check
        _
      $region38: #{tpu_custom_call.1} parent=5 // pred_check_branch
        %246 = sbr.rel (%p243) target = $region40
      $region39: #{tpu_custom_call.1} parent=5 // pred_region
        %s247 = ssub.s32 %s15, 1
        %s248 = sand.u32 %s42, 1
        %s249 = scalar_lea.sflag [#allocation3], %s248
        %s250 = sand.u32 %s42, 1
        %s251 = smul.addr %s250, 16
        %s252 = scalar_lea.vmem [#allocation2], %s251
        // Predicated region
        $region41: #{tpu_custom_call.1} parent=39 // pred_check
          %p253 = pneg %p55
        $region42: #{tpu_custom_call.1} parent=39 // pred_check_branch
          %255 = sbr.rel (%p253) target = $region44
        $region43: #{tpu_custom_call.1} parent=39 // pred_region
          %256 = dma.done %s249, 256
        $region44: #{tpu_custom_call.1} parent=39 // pred_fallthru
          _
        // Predicated region
        $region45: #{tpu_custom_call.1} parent=39 // pred_check
          %p257 = pneg %p76
        $region46: #{tpu_custom_call.1} parent=39 // pred_check_branch
          %259 = sbr.rel (%p257) target = $region48
        $region47: #{tpu_custom_call.1} parent=39 // pred_region
          %260 = dma.done [#allocation5], 1280
        $region48: #{tpu_custom_call.1} parent=39 // pred_fallthru
          _
        // Predicated region
        $region49: #{tpu_custom_call.1} parent=39 // pred_check
          %p261 = pneg %p118
        $region50: #{tpu_custom_call.1} parent=39 // pred_check_branch
          %263 = sbr.rel (%p261) target = $region52
        $region51: #{tpu_custom_call.1} parent=39 // pred_region
          %264 = dma.done [#allocation5], 2048
        $region52: #{tpu_custom_call.1} parent=39 // pred_fallthru
          _
        %s265 = sand.u32 %s42, 1
        %s266 = scalar_lea.sflag [#allocation3], %s265
        %s267 = sand.u32 %s42, 1
        %s268 = smul.addr %s267, 16
        %s269 = scalar_lea.vmem [#allocation2], %s268
        %p270 = pneg %p55
        %p271 = pneg %p52
        %p272 = pneg %p76
        %p273 = pneg %p73
        %p274 = pneg %p97
        %p275 = pneg %p94
        %p276 = pneg %p118
        %p277 = pneg %p115
        %p278 = pneg %p139
        %p279 = pneg %p136
        %p280 = pneg %p167
        %p281 = pneg %p164
        %s282 = smul.u32 2, %s25
        %p283 = scmp.lt.s32.totalorder %s24, 1
        %s284 = scalar_select %p283, %s24, 1
        %p285 = scmp.lt.s32.totalorder %s282, 1
        %s286 = scalar_select %p285, %s282, 1
        %s287 = smul.addr %s284, 2
        %s288 = sadd.s32 %s286, %s287
        %s289 = smul.addr %s288, 4
        %s290 = scalar_lea.vmem %s5, %s289
        %s291 = smul.u32 2, %s25
        %s292 = smul.u32 2, %s25
        %p293 = scmp.lt.s32.totalorder %s24, 1
        %s294 = scalar_select %p293, %s24, 1
        %p295 = scmp.lt.s32.totalorder %s292, 1
        %s296 = scalar_select %p295, %s292, 1
        %s297 = smul.addr %s294, 2
        %s298 = sadd.s32 %s296, %s297
        %s299 = smul.addr %s298, 4
        %s300 = scalar_lea.vmem %s5, %s299
        %s301 = smul.u32 2, %s25
        %v303 = vld [vmem:[%s252] sm:$0xff]
        %v304 = vld [vmem:[%s252 + $0x8] sm:$0xff]
        %v305 = vpack.c.bf16 %v304, %v303
        %v306 = vld [vmem:[#allocation4] sm:$0xff]
        %v307 = vld [vmem:[#allocation4 + $0x8] sm:$0xff]
        %v308 = vld [vmem:[#allocation4 + $0x10] sm:$0xff]
        %v309 = vld [vmem:[#allocation4 + $0x18] sm:$0xff]
        %v310 = vld [vmem:[#allocation4 + $0x20] sm:$0xff]
        %v311 = vld [vmem:[#allocation4 + $0x28] sm:$0xff]
        %v312 = vld [vmem:[#allocation4 + $0x30] sm:$0xff]
        %v313 = vld [vmem:[#allocation4 + $0x38] sm:$0xff]
        %v314 = vld [vmem:[#allocation4 + $0x40] sm:$0xff]
        %v315 = vld [vmem:[#allocation4 + $0x48] sm:$0xff]
        %v316 = vld [vmem:[%s2] sm:$0x3]
        %v318 = vlaneseq
        %v319 = vshrl.u32 %v318, 7
        %v320 = vsub.s32 0, %v319
        %v321 = vrot.slane %v316, %v320
        %v322 = vlaneseq
        %v323 = vshrl.u32 %v322, 7
        %v324 = vsub.s32 1, %v323
        %v325 = vrot.slane %v316, %v324
        %v338 = vunpack.c.l.b16 %v306
        %v339 = vunpack.c.h.b16 %v306
        %v340 = vunpack.c.l.b16 %v307
        %v341 = vunpack.c.h.b16 %v307
        %v342 = vunpack.c.l.b16 %v308
        %v343 = vunpack.c.h.b16 %v308
        %v344 = vunpack.c.l.b16 %v309
        %v345 = vunpack.c.h.b16 %v309
        %v346 = vunpack.c.l.b16 %v310
        %v347 = vunpack.c.h.b16 %v310
        %v348 = vunpack.c.l.b16 %v311
        %v349 = vunpack.c.h.b16 %v311
        %v350 = vunpack.c.l.b16 %v312
        %v351 = vunpack.c.h.b16 %v312
        %v352 = vunpack.c.l.b16 %v313
        %v353 = vunpack.c.h.b16 %v313
        %v354 = vunpack.c.l.b16 %v314
        %v355 = vunpack.c.h.b16 %v314
        %v356 = vunpack.c.l.b16 %v315
        %v357 = vunpack.c.h.b16 %v315
        %v358 = vpack.c.b16 %v340, %v338
        %v359 = vpack.c.b16 %v341, %v339
        %v360 = vpack.c.b16 %v344, %v342
        %v361 = vpack.c.b16 %v345, %v343
        %v362 = vpack.c.b16 %v348, %v346
        %v363 = vpack.c.b16 %v349, %v347
        %v364 = vpack.c.b16 %v352, %v350
        %v365 = vpack.c.b16 %v353, %v351
        %v366 = vpack.c.b16 %v356, %v354
        %v367 = vpack.c.b16 %v357, %v355
        %vm378 = vcmask 654336
        %v380 = vsel %vm378, %v305, 0
        %382 = vmatprep.subr.bf16.mxu0 0
        %383 = vmatpush1.bf16.msra.mxu0 0
        %384 = vmatprep.subr.bf16.mxu0 0
        %385 = vmatpush1.bf16.msra.mxu0 0
        %386 = vmatprep.subr.bf16.mxu0 0
        %387 = vmatpush1.bf16.msra.mxu0 0
        %388 = vmatprep.subr.bf16.mxu0 %v367
        %389 = vmatpush1.bf16.msra.mxu0 %v366
        %390 = vmatprep.subr.bf16.mxu0 %v365
        %391 = vmatpush1.bf16.msra.mxu0 %v364
        %392 = vmatprep.subr.bf16.mxu0 %v363
        %393 = vmatpush1.bf16.msra.mxu0 %v362
        %394 = vmatprep.subr.bf16.mxu0 %v361
        %395 = vmatpush1.bf16.msra.mxu0 %v360
        %396 = vmatprep.subr.bf16.mxu0 %v359
        %397 = vmatpush1.bf16.msra.mxu0 %v358
        %398 = vmatprep.subr.bf16.mxu0 0
        %399 = vmatpush2.bf16.msra.mxu0 0
        %400 = vmatprep.subr.bf16.mxu0 0
        %401 = vmatpush2.bf16.msra.mxu0 0
        %402 = vmatprep.subr.bf16.mxu0 0
        %403 = vmatpush2.bf16.msra.mxu0 0
        %404 = vmatprep.subr.bf16.mxu0 0
        %405 = vmatpush2.bf16.msra.mxu0 0
        %406 = vmatprep.subr.bf16.mxu0 0
        %407 = vmatpush2.bf16.msra.mxu0 0
        %408 = vmatprep.subr.bf16.mxu0 0
        %409 = vmatpush2.bf16.msra.mxu0 0
        %410 = vmatprep.subr.bf16.mxu0 0
        %411 = vmatpush2.bf16.msra.mxu0 0
        %412 = vmatprep.subr.bf16.mxu0 0
        %413 = vmatpush2.bf16.msra.mxu0 0
        %414 = vmatprep.mubr.bf16.mxu0 0
        %415 = vmatmul.mubr.bf16.gmra.mxu0 %v380
        %v416 = vpop.f32.mrf.mxu0
        %v417 = vadd.f32 %v321, %v416
        %v418 = vpop.f32.mrf.mxu0
        %v419 = vadd.f32 %v325, %v418
        %v420 = vpop.f32.mrf.mxu0
        %v421 = vadd.f32 %v321, %v420
        %v422 = vpop.f32.mrf.mxu0
        %v423 = vadd.f32 %v325, %v422
        %424 = vdwg.mxu0
        %v425 = vtanh.pop %v417
        %v426 = vtanh.pop %v419
        %v427 = vtanh.pop %v421
        %v428 = vtanh.pop %v423
        %v429 = vpack.c.bf16 %v427, %v425
        %v430 = vpack.c.bf16 %v428, %v426
        %v431 = vld [vmem:[#allocation6] sm:$0xf]
        %v432 = vld [vmem:[#allocation6 + $0x4] sm:$0xf]
        %v433 = vld [vmem:[#allocation6 + $0x8] sm:$0xf]
        %v434 = vld [vmem:[#allocation6 + $0xc] sm:$0xf]
        %v435 = vld [vmem:[#allocation6 + $0x10] sm:$0xf]
        %v436 = vld [vmem:[#allocation6 + $0x14] sm:$0xf]
        %v437 = vld [vmem:[#allocation6 + $0x18] sm:$0xf]
        %v438 = vld [vmem:[#allocation6 + $0x1c] sm:$0xf]
        %v439 = vld [vmem:[#allocation6 + $0x20] sm:$0xf]
        %v440 = vld [vmem:[#allocation6 + $0x24] sm:$0xf]
        %v441 = vld [vmem:[#allocation6 + $0x28] sm:$0xf]
        %v442 = vld [vmem:[#allocation6 + $0x2c] sm:$0xf]
        %v443 = vld [vmem:[#allocation6 + $0x30] sm:$0xf]
        %v444 = vld [vmem:[#allocation6 + $0x34] sm:$0xf]
        %v445 = vld [vmem:[#allocation6 + $0x38] sm:$0xf]
        %v446 = vld [vmem:[#allocation6 + $0x3c] sm:$0xf]
        %v447 = vld [vmem:[#allocation6 + $0x40] sm:$0xf]
        %v448 = vld [vmem:[#allocation6 + $0x44] sm:$0xf]
        %v449 = vld [vmem:[#allocation6 + $0x48] sm:$0xf]
        %v450 = vld [vmem:[#allocation6 + $0x4c] sm:$0xf]
        %v451 = vld [vmem:[#allocation6 + $0x50] sm:$0xf]
        %v452 = vld [vmem:[#allocation6 + $0x54] sm:$0xf]
        %v453 = vld [vmem:[#allocation6 + $0x58] sm:$0xf]
        %v454 = vld [vmem:[#allocation6 + $0x5c] sm:$0xf]
        %v455 = vld [vmem:[#allocation6 + $0x60] sm:$0xf]
        %v456 = vld [vmem:[#allocation6 + $0x64] sm:$0xf]
        %v457 = vld [vmem:[#allocation6 + $0x68] sm:$0xf]
        %v458 = vld [vmem:[#allocation6 + $0x6c] sm:$0xf]
        %v459 = vld [vmem:[#allocation6 + $0x70] sm:$0xf]
        %v460 = vld [vmem:[#allocation6 + $0x74] sm:$0xf]
        %v461 = vld [vmem:[#allocation6 + $0x78] sm:$0xf]
        %v462 = vld [vmem:[#allocation6 + $0x7c] sm:$0xf]
        %v463 = vld [vmem:[%s4] sm:$0x1]
        %v465 = vlaneseq
        %v466 = vshrl.u32 %v465, 7
        %v467 = vsub.s32 0, %v466
        %v468 = vrot.slane %v463, %v467
        %v502 = vunpack.c.l.b16 %v431
        %v503 = vunpack.c.l.b16 %v432
        %v504 = vunpack.c.l.b16 %v433
        %v505 = vunpack.c.l.b16 %v434
        %v506 = vunpack.c.l.b16 %v435
        %v507 = vunpack.c.l.b16 %v436
        %v508 = vunpack.c.l.b16 %v437
        %v509 = vunpack.c.l.b16 %v438
        %v510 = vunpack.c.l.b16 %v439
        %v511 = vunpack.c.l.b16 %v440
        %v512 = vunpack.c.l.b16 %v441
        %v513 = vunpack.c.l.b16 %v442
        %v514 = vunpack.c.l.b16 %v443
        %v515 = vunpack.c.l.b16 %v444
        %v516 = vunpack.c.l.b16 %v445
        %v517 = vunpack.c.l.b16 %v446
        %v518 = vunpack.c.l.b16 %v447
        %v519 = vunpack.c.l.b16 %v448
        %v520 = vunpack.c.l.b16 %v449
        %v521 = vunpack.c.l.b16 %v450
        %v522 = vunpack.c.l.b16 %v451
        %v523 = vunpack.c.l.b16 %v452
        %v524 = vunpack.c.l.b16 %v453
        %v525 = vunpack.c.l.b16 %v454
        %v526 = vunpack.c.l.b16 %v455
        %v527 = vunpack.c.l.b16 %v456
        %v528 = vunpack.c.l.b16 %v457
        %v529 = vunpack.c.l.b16 %v458
        %v530 = vunpack.c.l.b16 %v459
        %v531 = vunpack.c.l.b16 %v460
        %v532 = vunpack.c.l.b16 %v461
        %v533 = vunpack.c.l.b16 %v462
        %v534 = vpack.c.b16 %v503, %v502
        %v535 = vpack.c.b16 %v505, %v504
        %v536 = vpack.c.b16 %v507, %v506
        %v537 = vpack.c.b16 %v509, %v508
        %v538 = vpack.c.b16 %v511, %v510
        %v539 = vpack.c.b16 %v513, %v512
        %v540 = vpack.c.b16 %v515, %v514
        %v541 = vpack.c.b16 %v517, %v516
        %v542 = vpack.c.b16 %v519, %v518
        %v543 = vpack.c.b16 %v521, %v520
        %v544 = vpack.c.b16 %v523, %v522
        %v545 = vpack.c.b16 %v525, %v524
        %v546 = vpack.c.b16 %v527, %v526
        %v547 = vpack.c.b16 %v529, %v528
        %v548 = vpack.c.b16 %v531, %v530
        %v549 = vpack.c.b16 %v533, %v532
        %566 = vmatprep.subr.bf16.mxu0 0
        %567 = vmatpush1.bf16.msra.mxu0 %v541
        %568 = vmatprep.subr.bf16.mxu0 0
        %569 = vmatpush1.bf16.msra.mxu0 %v540
        %570 = vmatprep.subr.bf16.mxu0 0
        %571 = vmatpush1.bf16.msra.mxu0 %v539
        %572 = vmatprep.subr.bf16.mxu0 0
        %573 = vmatpush1.bf16.msra.mxu0 %v538
        %574 = vmatprep.subr.bf16.mxu0 0
        %575 = vmatpush1.bf16.msra.mxu0 %v537
        %576 = vmatprep.subr.bf16.mxu0 0
        %577 = vmatpush1.bf16.msra.mxu0 %v536
        %578 = vmatprep.subr.bf16.mxu0 0
        %579 = vmatpush1.bf16.msra.mxu0 %v535
        %580 = vmatprep.subr.bf16.mxu0 0
        %581 = vmatpush1.bf16.msra.mxu0 %v534
        %582 = vmatprep.subr.bf16.mxu0 0
        %583 = vmatpush2.bf16.msra.mxu0 %v549
        %584 = vmatprep.subr.bf16.mxu0 0
        %585 = vmatpush2.bf16.msra.mxu0 %v548
        %586 = vmatprep.subr.bf16.mxu0 0
        %587 = vmatpush2.bf16.msra.mxu0 %v547
        %588 = vmatprep.subr.bf16.mxu0 0
        %589 = vmatpush2.bf16.msra.mxu0 %v546
        %590 = vmatprep.subr.bf16.mxu0 0
        %591 = vmatpush2.bf16.msra.mxu0 %v545
        %592 = vmatprep.subr.bf16.mxu0 0
        %593 = vmatpush2.bf16.msra.mxu0 %v544
        %594 = vmatprep.subr.bf16.mxu0 0
        %595 = vmatpush2.bf16.msra.mxu0 %v543
        %596 = vmatprep.subr.bf16.mxu0 0
        %597 = vmatpush2.bf16.msra.mxu0 %v542
        %598 = vmatprep.mubr.bf16.mxu0 %v430
        %599 = vmatmul.mubr.bf16.gmra.mxu0 %v429
        %v600 = vpop.f32.mrf.mxu0
        %v601 = vadd.f32 %v468, %v600
        %v602 = vpop.f32.mrf.mxu0
        %v603 = vpop.f32.mrf.mxu0
        %v604 = vadd.f32 %v468, %v603
        %v605 = vpop.f32.mrf.mxu0
        %606 = vdwg.mxu0
        %v607 = vpack.c.bf16 %v604, %v601
        %v609 = vunpack.c.l.b16 %v607
        %v610 = vunpack.c.h.b16 %v607
        %v611 = vpack.c.b16 %v609, %v609
        %v612 = vpack.c.b16 %v610, %v610
        %615 = vst [vmem:[%s300] sm:$0xf] %v611
        %616 = vst [vmem:[%s300 + $0x4] sm:$0xf] %v612
        %s617 = smul.u32 2, %s25
        %p618 = scmp.lt.s32.totalorder %s24, 1
        %s619 = scalar_select %p618, %s24, 1
        %p620 = scmp.lt.s32.totalorder %s617, 1
        %s621 = scalar_select %p620, %s617, 1
        %s622 = smul.addr %s619, 2
        %s623 = sadd.s32 %s621, %s622
        %s624 = smul.addr %s623, 4
        %s625 = scalar_lea.vmem %s5, %s624
        // Predicated region
        $region53: #{tpu_custom_call.1} parent=39 // pred_check
          %p626 = pneg %p164
        $region54: #{tpu_custom_call.1} parent=39 // pred_check_branch
          %628 = sbr.rel (%p626) target = $region56
        $region55: #{tpu_custom_call.1} parent=39 // pred_region
          %s629 = smul.u32 2, %s25
        $region56: #{tpu_custom_call.1} parent=39 // pred_fallthru
          _
      $region40: #{tpu_custom_call.1} parent=5 // pred_fallthru
        _
      %p630 = scmp.le.s32.totalorder 2, %s15
      // Predicated region
      $region57: #{tpu_custom_call.1} parent=5 // pred_check
        %p631 = pneg %p630
      $region58: #{tpu_custom_call.1} parent=5 // pred_check_branch
        %633 = sbr.rel (%p631) target = $region60
      $region59: #{tpu_custom_call.1} parent=5 // pred_region
        %s634 = ssub.s32 %s15, 2
        // Predicated region
        $region61: #{tpu_custom_call.1} parent=59 // pred_check
          %p635 = pneg %p170
        $region62: #{tpu_custom_call.1} parent=59 // pred_check_branch
          %637 = sbr.rel (%p635) target = $region64
        $region63: #{tpu_custom_call.1} parent=59 // pred_region
          %s638 = smul.u32 2, %s27
          %p639 = scmp.lt.s32.totalorder %s26, 1
          %s640 = scalar_select %p639, %s26, 1
          %p641 = scmp.lt.s32.totalorder %s638, 1
          %s642 = scalar_select %p641, %s638, 1
          %s643 = smul.addr %s640, 2
          %s644 = sadd.s32 %s642, %s643
          %s645 = smul.addr %s644, 4
          %s646 = scalar_lea.vmem %s5, %s645
        $region64: #{tpu_custom_call.1} parent=59 // pred_fallthru
          _
      $region60: #{tpu_custom_call.1} parent=5 // pred_fallthru
        _
    $region6: #{tpu_custom_call.1} parent=1 // loop_footer
      %s19 = sadd.s32 1, %s15
    $region7: #{tpu_custom_call.1} parent=1 // loop_footer_branch
      %14 = sbr.rel target = $region3
    $region8: #{tpu_custom_call.1} parent=1 // loop_exit
      _
    %647 = vsyncpa [#allocation3], 1
    %s648 = scalar_lea.sflag [#allocation3], 1
    %649 = vsyncpa %s648, 1
    %650 = vsyncpa [#allocation5], 1

</llo_original>
